<compile_context>
chip_gen: v7x
topology: tpu7x:2x2x1
jax: 0.10.0
libtpu: 0.0.40
codegen_flags: <defaults>
</compile_context>

<pallas_src>
import functools

import jax
import jax.numpy as jnp
from jax.experimental import pallas as pl
from jax.experimental.pallas import tpu as pltpu


def _round_up(x, m):
    return ((x + m - 1) // m) * m


def _cdiv(a, b):
    return (a + b - 1) // b


def _sublane_tile(dtype):
    return {4: 8, 2: 16, 1: 32}.get(jnp.dtype(dtype).itemsize, 8)


def _mvcb_bce_kernel(p_ref, y_ref, out_ref, acc_ref, *, hard_labels):
    """One (R, TN) batch tile of the fused concept+target BCE reduction.

    p_ref  : (R, TN)   probabilities, lane-dense (batch on lanes); rows 0..C-1
                       are concepts, row C is the target head, rows > C padding.
    y_ref  : (R, TN)   labels in their native (narrow) dtype.
    out_ref: (1, R, 1) per-row partial BCE sums for this core group.
    acc_ref: (R, TN)   f32 scratch; elementwise accumulator (reduction is
                       deferred to the finalize step).
    """
    i = pl.program_id(1)

    @pl.when(i == 0)
    def _():
        acc_ref[...] = jnp.zeros_like(acc_ref)

    p = p_ref[...].astype(jnp.float32)
    if hard_labels:
        # One log per element: q = p if y==1 else (1-p).  Exact for 0/1 labels.
        q = jnp.where(y_ref[...] != 0, p, 1.0 - p)
        bce = -jnp.maximum(jnp.log(q), -100.0)      # torch's -100 log clamp
    else:
        # General soft-label BCE with torch's -100 clamp on each log term.
        y = y_ref[...].astype(jnp.float32)
        log_p = jnp.maximum(jnp.log(p), -100.0)
        log_1mp = jnp.maximum(jnp.log(1.0 - p), -100.0)
        bce = -(log_1mp + y * (log_p - log_1mp))

    # Plain VPU add into scratch; no per-tile XLU reduce, no per-tile store.
    acc_ref[...] += bce

    @pl.when(i == pl.num_programs(1) - 1)
    def _():
        out_ref[...] = jnp.sum(acc_ref[...], axis=1, keepdims=True)[None]


def mvcb_loss(concepts_pred, concepts_true, target_pred_probs,
              target_pred_logits, target_true, alpha=1.0,
              hard_labels=True, tile_n=None):
    """JAX/Pallas equivalent of MVCBLoss.forward (num_classes=2 defaults).

    concepts_pred:      (N, C) probabilities in (0, 1)   (any float dtype)
    concepts_true:      (N, C) 0/1 labels                (float/int/bool)
    target_pred_probs:  (N,)   probabilities in (0, 1)
    target_pred_logits: (N, K) unused on the binary path (signature parity)
    target_true:        (N,)   0/1 labels
    hard_labels:        True -> single-log BCE (exact only for 0/1 labels);
                        False -> exact two-log formula (soft-target capable).
    Returns (target_loss, concepts_loss[(C,) array], summed_concepts_loss,
             total_loss).
    """
    del target_pred_logits  # only the (unimplemented) multi-class branch uses it
    n, c = concepts_pred.shape
    rows = c + 1                        # concept rows + 1 target-head row
    r = _round_up(rows, 8)              # pad rows to the f32 sublane tile

    prob_dtype = jnp.promote_types(concepts_pred.dtype, target_pred_probs.dtype)
    label_dtype = jnp.promote_types(concepts_true.dtype, target_true.dtype)
    if jnp.dtype(label_dtype) == jnp.dtype(jnp.bool_):
        label_dtype = jnp.int8          # keep labels narrow but Mosaic-friendly

    # ---- tile size from the padded-vreg footprint (lanes already x128;
    #      sublanes pad to 8/16/32 by dtype).  Budget: 2 inputs x 2 pipeline
    #      buffers + acc scratch + f32 temporaries <= 16 MiB (v7x-safe). ----
    p_rows_pad = _round_up(r, _sublane_tile(prob_dtype))
    y_rows_pad = _round_up(r, _sublane_tile(label_dtype))
    per_col_bytes = (2 * p_rows_pad * jnp.dtype(prob_dtype).itemsize
                     + 2 * y_rows_pad * jnp.dtype(label_dtype).itemsize
                     + r * 4            # accumulator scratch
                     + 4 * r * 4)       # headroom for in-kernel f32 temporaries
    budget = 16 * 1024 * 1024
    if tile_n is not None:
        tn = max(_round_up(int(tile_n), 128), 128)
    else:
        tn = 32768
        while tn > 128 and per_col_bytes * tn > budget:
            tn //= 2
    tn = min(tn, _round_up(max(n, 1), 128))

    total_tiles = _cdiv(max(n, 1), tn)
    groups = 2 if total_tiles >= 2 else 1   # v7x: 2 TCs; harmless on v5e/v6e
    tiles_per_group = _cdiv(total_tiles, groups)
    n_pad = groups * tiles_per_group * tn

    # ---- single producer pass: fuse target row in, relayout lane-dense
    #      (batch -> lanes), pad rows/columns with (p=1, y=1) => exactly 0 BCE.
    p_mat = jnp.concatenate(
        [concepts_pred.astype(prob_dtype).T,
         target_pred_probs.astype(prob_dtype).reshape(1, n)], axis=0)
    y_mat = jnp.concatenate(
        [concepts_true.astype(label_dtype).T,
         target_true.astype(label_dtype).reshape(1, n)], axis=0)
    p_mat = jnp.pad(p_mat, ((0, r - rows), (0, n_pad - n)), constant_values=1)
    y_mat = jnp.pad(y_mat, ((0, r - rows), (0, n_pad - n)), constant_values=1)

    kernel = functools.partial(_mvcb_bce_kernel, hard_labels=bool(hard_labels))

    partials = pl.pallas_call(
        kernel,
        grid=(groups, tiles_per_group),
        in_specs=[
            pl.BlockSpec((r, tn), lambda g, i: (0, g * tiles_per_group + i)),
            pl.BlockSpec((r, tn), lambda g, i: (0, g * tiles_per_group + i)),
        ],
        out_specs=pl.BlockSpec((1, r, 1), lambda g, i: (g, 0, 0)),
        out_shape=jax.ShapeDtypeStruct((groups, r, 1), jnp.float32),
        scratch_shapes=[pltpu.VMEM((r, tn), jnp.float32)],
        compiler_params=pltpu.CompilerParams(
            dimension_semantics=("parallel", "arbitrary"),
            vmem_limit_bytes=32 * 1024 * 1024,
        ),
    )(p_mat, y_mat)

    # ---- tiny scalar epilogue: combine per-core partials, divide by true N,
    #      fuse the sums.  Keeps alpha / N out of the compiled kernel. ----
    sums = jnp.sum(partials[:, :, 0], axis=0)        # (r,)
    means = sums / n
    concepts_loss = means[:c]                        # (C,) array
    target_loss = means[c]
    summed_concepts_loss = jnp.sum(concepts_loss)
    total_loss = target_loss + alpha * summed_concepts_loss
    return target_loss, concepts_loss, summed_concepts_loss, total_loss


if __name__ == "__main__":
    key = jax.random.PRNGKey(0)
    k = jax.random.split(key, 10)

    # plain-JAX reference (same -100 clamp as torch F.binary_cross_entropy)
    def bce_mean(p, y):
        lp = jnp.maximum(jnp.log(p), -100.0)
        l1p = jnp.maximum(jnp.log(1.0 - p), -100.0)
        return jnp.mean(-(y * lp + (1.0 - y) * l1p))

    def reference(cp, ct, tpp, tt, alpha):
        ctf = ct.astype(jnp.float32)
        ttf = tt.astype(jnp.float32)
        ref_c = jnp.stack([bce_mean(cp[:, i], ctf[:, i])
                           for i in range(cp.shape[1])])
        ref_t = bce_mean(tpp, ttf)
        ref_s = jnp.sum(ref_c)
        return ref_t, ref_c, ref_s, ref_t + alpha * ref_s

    def check(got, ref):
        for g, rv in zip(got, ref):
            assert jnp.allclose(g, rv, atol=1e-5, rtol=1e-4), (g, rv)

    # --- case 1: small ragged batch (N not a multiple of 128), f32 labels,
    #             default tiling (single tile, single core group) ------------
    N, C, K = 20, 4, 2
    cp = jax.nn.sigmoid(jax.random.normal(k[0], (N, C), jnp.float32))
    ct = (jax.random.uniform(k[1], (N, C)) > 0.5).astype(jnp.float32)
    tpl = jax.random.normal(k[2], (N, K), jnp.float32)
    tpp = jax.nn.sigmoid(jax.random.normal(k[3], (N,), jnp.float32))
    tt = (jax.random.uniform(k[4], (N,)) > 0.5).astype(jnp.float32)

    ref = reference(cp, ct, tpp, tt, 1.0)
    got = mvcb_loss(cp, ct, tpp, tpl, tt, alpha=1.0)
    jax.block_until_ready(got[3])
    check(got, ref)

    # exact two-log (soft-label-capable) path on the same data
    got = mvcb_loss(cp, ct, tpp, tpl, tt, alpha=1.0, hard_labels=False)
    jax.block_until_ready(got[3])
    check(got, ref)

    # --- case 2: bigger ragged batch, narrow int8 labels, forced tile_n=128
    #             -> multi-tile reduction + 2 core groups (v7x split path) ---
    N2, C2 = 300, 3
    cp2 = jax.nn.sigmoid(jax.random.normal(k[5], (N2, C2), jnp.float32))
    ct2 = (jax.random.uniform(k[6], (N2, C2)) > 0.5).astype(jnp.int8)
    tpl2 = jax.random.normal(k[7], (N2, K), jnp.float32)
    tpp2 = jax.nn.sigmoid(jax.random.normal(k[8], (N2,), jnp.float32))
    tt2 = (jax.random.uniform(k[9], (N2,)) > 0.5).astype(jnp.int8)

    ref2 = reference(cp2, ct2, tpp2, tt2, 0.7)
    got2 = mvcb_loss(cp2, ct2, tpp2, tpl2, tt2, alpha=0.7, tile_n=128)
    jax.block_until_ready(got2[3])
    check(got2, ref2)

    print("KERNEL_OK")
</pallas_src>

<mosaic_0001>
module attributes {stable_mosaic.version = 11 : i64} {
  func.func @_mvcb_bce_kernel(%arg0: i32, %arg1: i32, %arg2: memref<8x128xf32, #tpu.memory_space<vmem>>, %arg3: memref<8x128xf32, #tpu.memory_space<vmem>>, %arg4: memref<1x8x1xf32, #tpu.memory_space<vmem>>, %arg5: memref<8x128xf32, #tpu.memory_space<vmem>>) attributes {dimension_semantics = [#tpu.dimension_semantics<parallel>, #tpu.dimension_semantics<arbitrary>], iteration_bounds = array<i64: 1, 1>, scalar_prefetch = 0 : i64, scratch_operands = 1 : i64, tpu.core_type = #tpu.core_type<tc>, window_params = [{transform_indices = @transform_0, window_bounds = array<i64: 8, 128>}, {transform_indices = @transform_1, window_bounds = array<i64: 8, 128>}, {transform_indices = @transform_2, window_bounds = array<i64: 1, 8, 1>}]} {
    %c0_i32 = arith.constant 0 : i32
    %0 = arith.cmpi eq, %arg1, %c0_i32 : i32
    %1 = arith.extui %0 : i1 to i32
    %c0_i32_0 = arith.constant 0 : i32
    %2 = arith.cmpi ne, %1, %c0_i32_0 : i32
    scf.if %2 {
      %cst_13 = arith.constant 0.000000e+00 : f32
      %21 = vector.broadcast %cst_13 : f32 to vector<8x128xf32>
      %c0_14 = arith.constant 0 : index
      %c0_15 = arith.constant 0 : index
      %22 = vector.load %arg5[%c0_14, %c0_15] : memref<8x128xf32, #tpu.memory_space<vmem>>, vector<8x128xf32>
      tpu.vector_store %arg5[%c0_14, %c0_15], %21 {strides = array<i32>} : memref<8x128xf32, #tpu.memory_space<vmem>>, vector<8x128xf32>,
    } else {
    }
    %c0 = arith.constant 0 : index
    %c0_1 = arith.constant 0 : index
    %3 = vector.load %arg2[%c0, %c0_1] : memref<8x128xf32, #tpu.memory_space<vmem>>, vector<8x128xf32>
    %c0_2 = arith.constant 0 : index
    %c0_3 = arith.constant 0 : index
    %4 = vector.load %arg3[%c0_2, %c0_3] : memref<8x128xf32, #tpu.memory_space<vmem>>, vector<8x128xf32>
    %cst = arith.constant 0.000000e+00 : f32
    %5 = vector.broadcast %cst : f32 to vector<8x128xf32>
    %6 = arith.cmpf one, %4, %5 : vector<8x128xf32>
    %cst_4 = arith.constant 1.000000e+00 : f32
    %7 = vector.broadcast %cst_4 : f32 to vector<8x128xf32>
    %8 = arith.subf %7, %3 : vector<8x128xf32>
    %9 = arith.select %6, %3, %8 : vector<8x128xi1>, vector<8x128xf32>
    %10 = math.log %9 : vector<8x128xf32>
    %cst_5 = arith.constant -1.000000e+02 : f32
    %11 = vector.broadcast %cst_5 : f32 to vector<8x128xf32>
    %12 = arith.maximumf %10, %11 : vector<8x128xf32>
    %cst_6 = arith.constant 0.000000e+00 : f32
    %13 = vector.broadcast %cst_6 : f32 to vector<8x128xf32>
    %14 = arith.subf %13, %12 : vector<8x128xf32>
    %c0_7 = arith.constant 0 : index
    %c0_8 = arith.constant 0 : index
    %15 = vector.load %arg5[%c0_7, %c0_8] : memref<8x128xf32, #tpu.memory_space<vmem>>, vector<8x128xf32>
    %16 = arith.addf %15, %14 : vector<8x128xf32>
    %c0_9 = arith.constant 0 : index
    %c0_10 = arith.constant 0 : index
    %17 = vector.load %arg5[%c0_9, %c0_10] : memref<8x128xf32, #tpu.memory_space<vmem>>, vector<8x128xf32>
    tpu.vector_store %arg5[%c0_9, %c0_10], %16 {strides = array<i32>} : memref<8x128xf32, #tpu.memory_space<vmem>>, vector<8x128xf32>,
    %c0_i32_11 = arith.constant 0 : i32
    %18 = arith.cmpi eq, %arg1, %c0_i32_11 : i32
    %19 = arith.extui %18 : i1 to i32
    %c0_i32_12 = arith.constant 0 : i32
    %20 = arith.cmpi ne, %19, %c0_i32_12 : i32
    scf.if %20 {
      %c0_13 = arith.constant 0 : index
      %c0_14 = arith.constant 0 : index
      %21 = vector.load %arg5[%c0_13, %c0_14] : memref<8x128xf32, #tpu.memory_space<vmem>>, vector<8x128xf32>
      %cst_15 = arith.constant dense<0.000000e+00> : vector<8xf32>
      %22 = vector.multi_reduction <add>, %21, %cst_15 [1] : vector<8x128xf32> to vector<8xf32>
      %23 = vector.shape_cast %22 : vector<8xf32> to vector<8x1xf32>
      %24 = vector.shape_cast %23 : vector<8x1xf32> to vector<1x8x1xf32>
      %c0_16 = arith.constant 0 : index
      %c0_17 = arith.constant 0 : index
      %c0_18 = arith.constant 0 : index
      %25 = vector.load %arg4[%c0_16, %c0_17, %c0_18] : memref<1x8x1xf32, #tpu.memory_space<vmem>>, vector<1x8x1xf32>
      tpu.vector_store %arg4[%c0_16, %c0_17, %c0_18], %24 {strides = array<i32>} : memref<1x8x1xf32, #tpu.memory_space<vmem>>, vector<1x8x1xf32>,
    } else {
    }
    return
  }
  func.func @transform_0(%arg0: i32, %arg1: i32) -> (i32, i32) {
    %c1_i32 = arith.constant 1 : i32
    %0 = arith.muli %arg0, %c1_i32 : i32
    %1 = arith.addi %0, %arg1 : i32
    %c0_i32 = arith.constant 0 : i32
    %c0_i32_0 = arith.constant 0 : i32
    return %c0_i32, %1 : i32, i32
  }
  func.func @transform_1(%arg0: i32, %arg1: i32) -> (i32, i32) {
    %c1_i32 = arith.constant 1 : i32
    %0 = arith.muli %arg0, %c1_i32 : i32
    %1 = arith.addi %0, %arg1 : i32
    %c0_i32 = arith.constant 0 : i32
    %c0_i32_0 = arith.constant 0 : i32
    return %c0_i32, %1 : i32, i32
  }
  func.func @transform_2(%arg0: i32, %arg1: i32) -> (i32, i32, i32) {
    %c0_i32 = arith.constant 0 : i32
    %c0_i32_0 = arith.constant 0 : i32
    %c0_i32_1 = arith.constant 0 : i32
    return %arg0, %c0_i32, %c0_i32_0 : i32, i32, i32
  }
}

</mosaic_0001>

<llo_original>
// kernel: tpu_custom_call.1
$region0: #{tpu_custom_call.1}
  #allocation0 [shape = 'u32[]', space=smem, size = 0x4, offset = 0x4, fixed_abs, tag = 'smem constant byte address 0x4 - core index']
  #allocation1 [shape = 'u32[144,128]{1,0:T(1,128)}', space=vmem, size = 0x12000, scoped, tag = 'internal scratch']
  #allocation2 [shape = 'f32[8,128]{1,0:T(8,128)}', space=vmem, size = 0x1000, scoped, tag = 'scratch operand']
  %s0 = inlined_call_operand.hbm [shape: f32[8,128], index: 0, kind: input, shape index: {}]
  %s1 = inlined_call_operand.hbm [shape: f32[8,128], index: 1, kind: input, shape index: {}]
  %s2 = inlined_call_operand.vmem [shape: f32[1,8,1], index: 2, kind: output, shape index: {}]
  %s3 = sld [smem:[#allocation0]]
  $region34: #{tpu_custom_call.1} parent=0
    _
  %s5 = ssub.s32 1, %s3
  %s6 = scalar_select 0, %s5, %s3
  $region1: #{tpu_custom_call.1} parent=0
    #allocation3 [shape = 'u8[4096]{0}', space=vmem, size = 0x1000, scoped, tag = 'input window, operand 0, single buffered']
    #allocation4 [shape = 's32[1]{0}', space=sflag, size = 0x4, scoped, tag = 'scoped memory for tpu_custom_call.1']
    #allocation5 [shape = 'u8[4096]{0}', space=vmem, size = 0x1000, scoped, tag = 'input window, operand 1, single buffered']
    #allocation6 [shape = 's32[1]{0}', space=sflag, size = 0x4, scoped, tag = 'scoped memory for tpu_custom_call.1']
    %7 = vsyncpa [#allocation4], 0
    %8 = vsyncpa [#allocation6], 0
    // Predicated region
    $region2: #{tpu_custom_call.1} parent=1 // pred_check
      _
    $region3: #{tpu_custom_call.1} parent=1 // pred_check_branch
      %10 = sbr.rel (0) target = $region5
    $region4: #{tpu_custom_call.1} parent=1 // pred_region
      %s11 = sadd.s32 0, 0
      %s13 = ssub.s32 128, 128
      %14 = vsyncadd [#allocation4], %s13
      %s15 = smul.addr %s11, 128
      %s16 = scalar_lea.hbm %s0, %s15
      %s18 = sshll.u32 [#allocation3], 4
      %s19 = int_to_ptr.vmem [resolvable:$true] %s18
      %21 = dma.hbm_to_vmem [thread:$0]  %s16, 128, %s19, [#allocation4]
    $region5: #{tpu_custom_call.1} parent=1 // pred_fallthru
      _
    // Predicated region
    $region6: #{tpu_custom_call.1} parent=1 // pred_check
      _
    $region7: #{tpu_custom_call.1} parent=1 // pred_check_branch
      %23 = sbr.rel (0) target = $region9
    $region8: #{tpu_custom_call.1} parent=1 // pred_region
      %s24 = sadd.s32 0, 0
      %s26 = ssub.s32 128, 128
      %27 = vsyncadd [#allocation6], %s26
      %s28 = smul.addr %s24, 128
      %s29 = scalar_lea.hbm %s1, %s28
      %s31 = sshll.u32 [#allocation5], 4
      %s32 = int_to_ptr.vmem [resolvable:$true] %s31
      %34 = dma.hbm_to_vmem [thread:$0]  %s29, 128, %s32, [#allocation6]
    $region9: #{tpu_custom_call.1} parent=1 // pred_fallthru
      _
    // Predicated region
    $region10: #{tpu_custom_call.1} parent=1 // pred_check
      _
    $region11: #{tpu_custom_call.1} parent=1 // pred_check_branch
      %36 = sbr.rel (0) target = $region13
    $region12: #{tpu_custom_call.1} parent=1 // pred_region
      %37 = dma.done [#allocation4], 128
    $region13: #{tpu_custom_call.1} parent=1 // pred_fallthru
      _
    // Predicated region
    $region14: #{tpu_custom_call.1} parent=1 // pred_check
      _
    $region15: #{tpu_custom_call.1} parent=1 // pred_check_branch
      %39 = sbr.rel (0) target = $region17
    $region16: #{tpu_custom_call.1} parent=1 // pred_region
      %40 = dma.done [#allocation6], 128
    $region17: #{tpu_custom_call.1} parent=1 // pred_fallthru
      _
    %s41 = sadd.s32 0, 0
    %s42 = sadd.s32 0, 0
    %p43 = scmp.eq.s32.totalorder 0, 0
    // Predicated region
    $region18: #{tpu_custom_call.1} parent=1 // pred_check
      %p44 = pneg %p43
    $region19: #{tpu_custom_call.1} parent=1 // pred_check_branch
      %46 = sbr.rel (%p44) target = $region21
    $region20: #{tpu_custom_call.1} parent=1 // pred_region
      %47 = vst [vmem:[#allocation2] sm:$0xff] 0.0
    $region21: #{tpu_custom_call.1} parent=1 // pred_fallthru
      _
    %v48 = vld [vmem:[#allocation3] sm:$0xff]
    %v49 = vld [vmem:[#allocation5] sm:$0xff]
    %vm50 = vcmp.ne.f32.partialorder %v49, 0.0
    %v51 = vsub.f32 1.0, %v48
    %v52 = vsel %vm50, %v48, %v51
    %v53 = vlog2.pop %v52
    %v54 = vmul.f32 %v53, 0.6931472
    %v55 = vmax.f32 %v54, -100.0
    %v56 = vsub.f32 0.0, %v55
    %v57 = vld [vmem:[#allocation2] sm:$0xff]
    %v58 = vadd.f32 %v57, %v56
    %59 = vst [vmem:[#allocation2] sm:$0xff] %v58
    // Predicated region
    $region22: #{tpu_custom_call.1} parent=1 // pred_check
      %p60 = pneg %p43
    $region23: #{tpu_custom_call.1} parent=1 // pred_check_branch
      %62 = sbr.rel (%p60) target = $region25
    $region24: #{tpu_custom_call.1} parent=1 // pred_region
      %v63 = vld [vmem:[#allocation2] sm:$0xff]
      %64 = vadd.xlane.f32.xlu0 %v63
      %v65 = vpop.xlane.xlu0 %64
      %vm66 = vcmask 7168
      %67 = vst.msk [vmem:[%s2] sm:$0xff] %vm66, %v65
    $region25: #{tpu_custom_call.1} parent=1 // pred_fallthru
      _
    // Predicated region
    $region26: #{tpu_custom_call.1} parent=1 // pred_check
      _
    $region27: #{tpu_custom_call.1} parent=1 // pred_check_branch
      %69 = sbr.rel (0) target = $region29
    $region28: #{tpu_custom_call.1} parent=1 // pred_region
      _
    $region29: #{tpu_custom_call.1} parent=1 // pred_fallthru
      _
    // Predicated region
    $region30: #{tpu_custom_call.1} parent=1 // pred_check
      _
    $region31: #{tpu_custom_call.1} parent=1 // pred_check_branch
      %71 = sbr.rel (0) target = $region33
    $region32: #{tpu_custom_call.1} parent=1 // pred_region
      _
    $region33: #{tpu_custom_call.1} parent=1 // pred_fallthru
      _
    %72 = vsyncpa [#allocation4], 1
    %73 = vsyncpa [#allocation6], 1

</llo_original>
